<compile_context>
chip_gen: v7x
topology: tpu7x:2x2x1
jax: 0.10.0
libtpu: 0.0.40
codegen_flags: <defaults>
</compile_context>

<pallas_src>
import jax
import jax.numpy as jnp
from jax.experimental import pallas as pl
from jax.experimental.pallas import tpu as pltpu


def _lstm_linear_kernel(x_ref, wih_ref, whh_ref, b_ref, wlin_ref, blin_ref, out_ref):
    """One batch-tile: hoisted input projection + LSTM unroll over T + linear head.

    x_ref    : (T, Bt, F)  f32   time-major batch tile
    wih_ref  : (F, 4H)     bf16
    whh_ref  : (H, 4H)     bf16
    b_ref    : (1, 4H)     f32   (= b_ih + b_hh)
    wlin_ref : (1, H)      f32   (linear head as a row -> lane reduction, no MXU)
    blin_ref : (1, 1)      f32
    out_ref  : (Bt, 1)     f32
    """
    T, Bt, F = x_ref.shape
    H = whh_ref.shape[0]

    # ---- Hoisted input projection: one well-shaped MXU call, bias added once. ----
    x2 = x_ref[...].reshape(T * Bt, F).astype(jnp.bfloat16)          # sublane-only reshape
    xproj = jnp.dot(x2, wih_ref[...], preferred_element_type=jnp.float32)
    xproj = xproj + b_ref[...]                                       # (T*Bt, 4H) f32
    xproj = xproj.reshape(T, Bt, 4 * H)

    whh = whh_ref[...]                                               # (H, 4H) bf16

    h = jnp.zeros((Bt, H), jnp.float32)
    c = jnp.zeros((Bt, H), jnp.float32)

    # T is a small static trip count (sequence_length=2); Python unroll is fine here.
    # TODO(synk): switch to lax.fori_loop(..., unroll=k) if T becomes large.
    for t in range(T):
        if t == 0:
            gates = xproj[0]          # h0 == 0 -> recurrent term is exactly zero
        else:
            gates = xproj[t] + jnp.dot(h.astype(jnp.bfloat16), whh,
                                       preferred_element_type=jnp.float32)
        # Full-width EUP activations on the 128-lane gate vreg, then 32-lane slices.
        sig = jax.nn.sigmoid(gates)                                  # f32
        tnh = jnp.tanh(gates)                                        # f32
        i_g = sig[:, 0 * H:1 * H]
        f_g = sig[:, 1 * H:2 * H]
        g_g = tnh[:, 2 * H:3 * H]
        o_g = sig[:, 3 * H:4 * H]
        c = f_g * c + i_g * g_g
        h = o_g * jnp.tanh(c)

    # ---- Linear head: VPU multiply + cross-lane reduction (no N=1 MXU matmul). ----
    out = jnp.sum(h * wlin_ref[...], axis=-1, keepdims=True) + blin_ref[...]
    out_ref[...] = out                                               # (Bt, 1)


def sample_lstm_forward(x, params, sequence_length, num_features_per_element, b_tile=8):
    """JAX wrapper mirroring SampleLSTM.forward. Returns shape (B,).

    b_tile: batch tile per grid step (multiple of 8; use 128-256 for realistic batches).
    """
    B = x.shape[0]
    F = num_features_per_element
    T = sequence_length
    H = params["w_hh"].shape[0]

    # (B, T*F) -> (B, T, F) -> time-major (T, B, F) so per-step slices and the hoisted
    # projection reshape are sublane-clean inside the kernel.
    x3 = x.reshape(B, T, F).astype(jnp.float32)
    n_blocks = pl.cdiv(B, b_tile)
    B_pad = n_blocks * b_tile
    if B_pad != B:
        x3 = jnp.pad(x3, ((0, B_pad - B), (0, 0), (0, 0)))
    xt = jnp.transpose(x3, (1, 0, 2))                      # (T, B_pad, F)

    w_ih = params["w_ih"].astype(jnp.bfloat16)             # (F, 4H)  (= torch weight_ih_l0.T)
    w_hh = params["w_hh"].astype(jnp.bfloat16)             # (H, 4H)  (= torch weight_hh_l0.T)
    b = (params["b_ih"] + params["b_hh"]).reshape(1, 4 * H).astype(jnp.float32)
    w_lin = params["w_lin"].reshape(1, H).astype(jnp.float32)   # row form for lane reduction
    b_lin = params["b_lin"].reshape(1, 1).astype(jnp.float32)

    flops = (2 * B_pad * T * F * 4 * H            # hoisted input projection
             + 2 * B_pad * (T - 1) * H * 4 * H    # recurrent matmuls
             + 2 * B_pad * H)                     # linear head
    transcendentals = 5 * B_pad * T * H           # 3 sigmoid + 2 tanh per hidden unit/step
    bytes_accessed = (xt.size * 4 + w_ih.size * 2 + w_hh.size * 2
                      + b.size * 4 + w_lin.size * 4 + b_lin.size * 4 + B_pad * 4)

    out = pl.pallas_call(
        _lstm_linear_kernel,
        out_shape=jax.ShapeDtypeStruct((B_pad, 1), jnp.float32),
        grid_spec=pltpu.PrefetchScalarGridSpec(
            num_scalar_prefetch=0,
            grid=(n_blocks,),
            in_specs=[
                pl.BlockSpec((T, b_tile, F), lambda i: (0, i, 0)),
                pl.BlockSpec((F, 4 * H), lambda i: (0, 0)),
                pl.BlockSpec((H, 4 * H), lambda i: (0, 0)),
                pl.BlockSpec((1, 4 * H), lambda i: (0, 0)),
                pl.BlockSpec((1, H), lambda i: (0, 0)),
                pl.BlockSpec((1, 1), lambda i: (0, 0)),
            ],
            out_specs=pl.BlockSpec((b_tile, 1), lambda i: (i, 0)),
        ),
        compiler_params=pltpu.CompilerParams(
            dimension_semantics=("parallel",)),   # batch axis -> both TCs on v7x
        cost_estimate=pl.CostEstimate(
            flops=flops,
            transcendentals=transcendentals,
            bytes_accessed=bytes_accessed),
    )(xt, w_ih, w_hh, b, w_lin, b_lin)
    return out[:B].reshape(-1)                    # drop batch padding, .flatten()


def _reference_forward(x, params, T, F):
    """Pure-JAX f32 reference (same math) for correctness check."""
    B = x.shape[0]
    H = params["w_hh"].shape[0]
    x3 = x.reshape(B, T, F)
    h = jnp.zeros((B, H), jnp.float32)
    c = jnp.zeros((B, H), jnp.float32)
    b = params["b_ih"] + params["b_hh"]
    for t in range(T):
        gates = x3[:, t, :] @ params["w_ih"] + h @ params["w_hh"] + b
        i = jax.nn.sigmoid(gates[:, 0 * H:1 * H])
        f = jax.nn.sigmoid(gates[:, 1 * H:2 * H])
        g = jnp.tanh(gates[:, 2 * H:3 * H])
        o = jax.nn.sigmoid(gates[:, 3 * H:4 * H])
        c = f * c + i * g
        h = o * jnp.tanh(c)
    return (h @ params["w_lin"] + params["b_lin"]).reshape(-1)


def init_params(key, num_features_per_element, hidden):
    """Deterministic init matching torch shapes (uniform(-1/sqrt(H), 1/sqrt(H)))."""
    F, H = num_features_per_element, hidden
    k = 1.0 / jnp.sqrt(jnp.float32(H))
    keys = jax.random.split(key, 6)
    u = lambda kk, shape: jax.random.uniform(kk, shape, jnp.float32, -k, k)
    return {
        "w_ih": u(keys[0], (F, 4 * H)),   # torch weight_ih_l0 is (4H, F); we store transpose
        "w_hh": u(keys[1], (H, 4 * H)),   # torch weight_hh_l0 is (4H, H); we store transpose
        "b_ih": u(keys[2], (4 * H,)),
        "b_hh": u(keys[3], (4 * H,)),
        "w_lin": u(keys[4], (H, 1)),      # torch linear.weight is (1, H); we store transpose
        "b_lin": u(keys[5], (1,)),
    }


if __name__ == "__main__":
    # Small shapes consistent with the module: sequence_length=2 (as in the script),
    # batch=16 (two batch tiles of 8), features_per_element=16, hidden=32.
    B, T, F, H = 16, 2, 16, 32

    key = jax.random.PRNGKey(0)
    kx, kp = jax.random.split(key)
    x = jax.random.normal(kx, (B, T * F), jnp.float32)   # module reshapes internally
    params = init_params(kp, F, H)

    out = sample_lstm_forward(x, params, sequence_length=T,
                              num_features_per_element=F, b_tile=8)
    out = jax.block_until_ready(out)

    ref = jax.block_until_ready(_reference_forward(x, params, T, F))
    assert out.shape == (B,)
    assert bool(jnp.all(jnp.isfinite(out)))
    # bf16 MXU operands -> compare against the f32 reference with a loose tolerance.
    assert jnp.max(jnp.abs(out - ref)) < 3e-2, "mismatch vs reference"

    print("KERNEL_OK")
</pallas_src>

<mosaic_0001>
module attributes {stable_mosaic.version = 11 : i64} {
  func.func @_lstm_linear_kernel(%arg0: i32, %arg1: memref<2x8x16xf32, #tpu.memory_space<vmem>>, %arg2: memref<16x128xbf16, #tpu.memory_space<vmem>>, %arg3: memref<32x128xbf16, #tpu.memory_space<vmem>>, %arg4: memref<1x128xf32, #tpu.memory_space<vmem>>, %arg5: memref<1x32xf32, #tpu.memory_space<vmem>>, %arg6: memref<1x1xf32, #tpu.memory_space<vmem>>, %arg7: memref<8x1xf32, #tpu.memory_space<vmem>>) attributes {dimension_semantics = [#tpu.dimension_semantics<parallel>], iteration_bounds = array<i64: 2>, scalar_prefetch = 0 : i64, scratch_operands = 0 : i64, tpu.core_type = #tpu.core_type<tc>, window_params = [{transform_indices = @transform_0, window_bounds = array<i64: 2, 8, 16>}, {pipeline_mode = #tpu.pipeline_mode<synchronous>, transform_indices = @transform_1, window_bounds = array<i64: 16, 128>}, {pipeline_mode = #tpu.pipeline_mode<synchronous>, transform_indices = @transform_2, window_bounds = array<i64: 32, 128>}, {pipeline_mode = #tpu.pipeline_mode<synchronous>, transform_indices = @transform_3, window_bounds = array<i64: 1, 128>}, {pipeline_mode = #tpu.pipeline_mode<synchronous>, transform_indices = @transform_4, window_bounds = array<i64: 1, 32>}, {pipeline_mode = #tpu.pipeline_mode<synchronous>, transform_indices = @transform_5, window_bounds = array<i64: 1, 1>}, {transform_indices = @transform_6, window_bounds = array<i64: 8, 1>}]} {
    %c0 = arith.constant 0 : index
    %c0_0 = arith.constant 0 : index
    %c0_1 = arith.constant 0 : index
    %0 = vector.load %arg1[%c0, %c0_0, %c0_1] : memref<2x8x16xf32, #tpu.memory_space<vmem>>, vector<2x8x16xf32>
    %1 = vector.shape_cast %0 : vector<2x8x16xf32> to vector<16x16xf32>
    %2 = arith.truncf %1 : vector<16x16xf32> to vector<16x16xbf16>
    %c0_2 = arith.constant 0 : index
    %c0_3 = arith.constant 0 : index
    %3 = vector.load %arg2[%c0_2, %c0_3] : memref<16x128xbf16, #tpu.memory_space<vmem>>, vector<16x128xbf16>
    %cst = arith.constant dense<0.000000e+00> : vector<16x128xf32>
    %4 = tpu.matmul %2, %3, %cst {dimension_numbers = #tpu.dot_dimension_numbers<[1], [0], [0], [1], [0, 0, 1, 1], [], []>} : vector<16x16xbf16>, vector<16x128xbf16>, vector<16x128xf32> -> vector<16x128xf32>
    %c0_4 = arith.constant 0 : index
    %c0_5 = arith.constant 0 : index
    %5 = vector.load %arg4[%c0_4, %c0_5] : memref<1x128xf32, #tpu.memory_space<vmem>>, vector<1x128xf32>
    %6 = vector.broadcast %5 : vector<1x128xf32> to vector<16x128xf32>
    %7 = arith.addf %4, %6 : vector<16x128xf32>
    %8 = vector.shape_cast %7 : vector<16x128xf32> to vector<2x8x128xf32>
    %c0_6 = arith.constant 0 : index
    %c0_7 = arith.constant 0 : index
    %9 = vector.load %arg3[%c0_6, %c0_7] : memref<32x128xbf16, #tpu.memory_space<vmem>>, vector<32x128xbf16>
    %cst_8 = arith.constant 0.000000e+00 : f32
    %10 = vector.broadcast %cst_8 : f32 to vector<8x32xf32>
    %11 = vector.extract_strided_slice %8 {offsets = [0, 0, 0], sizes = [1, 8, 128], strides = [1, 1, 1]} : vector<2x8x128xf32> to vector<1x8x128xf32>
    %12 = vector.shape_cast %11 : vector<1x8x128xf32> to vector<8x128xf32>
    %13 = arith.negf %12 : vector<8x128xf32>
    %14 = math.exp %13 : vector<8x128xf32>
    %cst_9 = arith.constant 1.000000e+00 : f32
    %15 = vector.broadcast %cst_9 : f32 to vector<8x128xf32>
    %16 = arith.addf %15, %14 : vector<8x128xf32>
    %17 = arith.divf %15, %16 : vector<8x128xf32>
    %18 = math.tanh %12 : vector<8x128xf32>
    %19 = vector.extract_strided_slice %17 {offsets = [0, 0], sizes = [8, 32], strides = [1, 1]} : vector<8x128xf32> to vector<8x32xf32>
    %20 = vector.extract_strided_slice %17 {offsets = [0, 32], sizes = [8, 32], strides = [1, 1]} : vector<8x128xf32> to vector<8x32xf32>
    %21 = vector.extract_strided_slice %18 {offsets = [0, 64], sizes = [8, 32], strides = [1, 1]} : vector<8x128xf32> to vector<8x32xf32>
    %22 = vector.extract_strided_slice %17 {offsets = [0, 96], sizes = [8, 32], strides = [1, 1]} : vector<8x128xf32> to vector<8x32xf32>
    %23 = arith.mulf %20, %10 : vector<8x32xf32>
    %24 = arith.mulf %19, %21 : vector<8x32xf32>
    %25 = arith.addf %23, %24 : vector<8x32xf32>
    %26 = math.tanh %25 : vector<8x32xf32>
    %27 = arith.mulf %22, %26 : vector<8x32xf32>
    %28 = vector.extract_strided_slice %8 {offsets = [1, 0, 0], sizes = [1, 8, 128], strides = [1, 1, 1]} : vector<2x8x128xf32> to vector<1x8x128xf32>
    %29 = vector.shape_cast %28 : vector<1x8x128xf32> to vector<8x128xf32>
    %30 = arith.truncf %27 : vector<8x32xf32> to vector<8x32xbf16>
    %cst_10 = arith.constant dense<0.000000e+00> : vector<8x128xf32>
    %31 = tpu.matmul %30, %9, %cst_10 {dimension_numbers = #tpu.dot_dimension_numbers<[1], [0], [0], [1], [0, 0, 1, 1], [], []>} : vector<8x32xbf16>, vector<32x128xbf16>, vector<8x128xf32> -> vector<8x128xf32>
    %32 = arith.addf %29, %31 : vector<8x128xf32>
    %33 = arith.negf %32 : vector<8x128xf32>
    %34 = math.exp %33 : vector<8x128xf32>
    %cst_11 = arith.constant 1.000000e+00 : f32
    %35 = vector.broadcast %cst_11 : f32 to vector<8x128xf32>
    %36 = arith.addf %35, %34 : vector<8x128xf32>
    %37 = arith.divf %35, %36 : vector<8x128xf32>
    %38 = math.tanh %32 : vector<8x128xf32>
    %39 = vector.extract_strided_slice %37 {offsets = [0, 0], sizes = [8, 32], strides = [1, 1]} : vector<8x128xf32> to vector<8x32xf32>
    %40 = vector.extract_strided_slice %37 {offsets = [0, 32], sizes = [8, 32], strides = [1, 1]} : vector<8x128xf32> to vector<8x32xf32>
    %41 = vector.extract_strided_slice %38 {offsets = [0, 64], sizes = [8, 32], strides = [1, 1]} : vector<8x128xf32> to vector<8x32xf32>
    %42 = vector.extract_strided_slice %37 {offsets = [0, 96], sizes = [8, 32], strides = [1, 1]} : vector<8x128xf32> to vector<8x32xf32>
    %43 = arith.mulf %40, %25 : vector<8x32xf32>
    %44 = arith.mulf %39, %41 : vector<8x32xf32>
    %45 = arith.addf %43, %44 : vector<8x32xf32>
    %46 = math.tanh %45 : vector<8x32xf32>
    %47 = arith.mulf %42, %46 : vector<8x32xf32>
    %c0_12 = arith.constant 0 : index
    %c0_13 = arith.constant 0 : index
    %48 = vector.load %arg5[%c0_12, %c0_13] : memref<1x32xf32, #tpu.memory_space<vmem>>, vector<1x32xf32>
    %49 = vector.broadcast %48 : vector<1x32xf32> to vector<8x32xf32>
    %50 = arith.mulf %47, %49 : vector<8x32xf32>
    %cst_14 = arith.constant dense<0.000000e+00> : vector<8xf32>
    %51 = vector.multi_reduction <add>, %50, %cst_14 [1] : vector<8x32xf32> to vector<8xf32>
    %52 = vector.shape_cast %51 : vector<8xf32> to vector<8x1xf32>
    %c0_15 = arith.constant 0 : index
    %c0_16 = arith.constant 0 : index
    %53 = vector.load %arg6[%c0_15, %c0_16] : memref<1x1xf32, #tpu.memory_space<vmem>>, vector<1x1xf32>
    %54 = vector.broadcast %53 : vector<1x1xf32> to vector<8x1xf32>
    %55 = arith.addf %52, %54 : vector<8x1xf32>
    %c0_17 = arith.constant 0 : index
    %c0_18 = arith.constant 0 : index
    %56 = vector.load %arg7[%c0_17, %c0_18] : memref<8x1xf32, #tpu.memory_space<vmem>>, vector<8x1xf32>
    tpu.vector_store %arg7[%c0_17, %c0_18], %55 {strides = array<i32>} : memref<8x1xf32, #tpu.memory_space<vmem>>, vector<8x1xf32>,
    return
  }
  func.func @transform_0(%arg0: i32) -> (i32, i32, i32) {
    %c0_i32 = arith.constant 0 : i32
    %c0_i32_0 = arith.constant 0 : i32
    %c0_i32_1 = arith.constant 0 : i32
    return %c0_i32, %arg0, %c0_i32_0 : i32, i32, i32
  }
  func.func @transform_1(%arg0: i32) -> (i32, i32) {
    %c0_i32 = arith.constant 0 : i32
    %c0_i32_0 = arith.constant 0 : i32
    %c0_i32_1 = arith.constant 0 : i32
    return %c0_i32, %c0_i32_0 : i32, i32
  }
  func.func @transform_2(%arg0: i32) -> (i32, i32) {
    %c0_i32 = arith.constant 0 : i32
    %c0_i32_0 = arith.constant 0 : i32
    %c0_i32_1 = arith.constant 0 : i32
    return %c0_i32, %c0_i32_0 : i32, i32
  }
  func.func @transform_3(%arg0: i32) -> (i32, i32) {
    %c0_i32 = arith.constant 0 : i32
    %c0_i32_0 = arith.constant 0 : i32
    %c0_i32_1 = arith.constant 0 : i32
    return %c0_i32, %c0_i32_0 : i32, i32
  }
  func.func @transform_4(%arg0: i32) -> (i32, i32) {
    %c0_i32 = arith.constant 0 : i32
    %c0_i32_0 = arith.constant 0 : i32
    %c0_i32_1 = arith.constant 0 : i32
    return %c0_i32, %c0_i32_0 : i32, i32
  }
  func.func @transform_5(%arg0: i32) -> (i32, i32) {
    %c0_i32 = arith.constant 0 : i32
    %c0_i32_0 = arith.constant 0 : i32
    %c0_i32_1 = arith.constant 0 : i32
    return %c0_i32, %c0_i32_0 : i32, i32
  }
  func.func @transform_6(%arg0: i32) -> (i32, i32) {
    %c0_i32 = arith.constant 0 : i32
    %c0_i32_0 = arith.constant 0 : i32
    return %arg0, %c0_i32 : i32, i32
  }
}

</mosaic_0001>

<llo_original>
// kernel: tpu_custom_call.1
$region0: #{tpu_custom_call.1}
  #allocation0 [shape = 'u32[]', space=smem, size = 0x4, offset = 0x4, fixed_abs, tag = 'smem constant byte address 0x4 - core index']
  #allocation1 [shape = 'u32[144,128]{1,0:T(1,128)}', space=vmem, size = 0x12000, scoped, tag = 'internal scratch']
  #allocation2 [shape = 'f32[1,1]{1,0:T(1,128)S(1)}', space=vmem, size = 0x200, scoped, tag = 'scoped memory for tpu_custom_call.1']
  %s0 = inlined_call_operand.hbm [shape: f32[2,16,16], index: 0, kind: input, shape index: {}]
  %s1 = inlined_call_operand.hbm [shape: bf16[16,128], index: 1, kind: input, shape index: {}]
  %s2 = inlined_call_operand.hbm [shape: bf16[32,128], index: 2, kind: input, shape index: {}]
  %s3 = inlined_call_operand.vmem [shape: f32[1,128], index: 3, kind: input, shape index: {}]
  %s4 = inlined_call_operand.vmem [shape: f32[1,32], index: 4, kind: input, shape index: {}]
  %s5 = inlined_call_operand.<no memory space> [shape: f32[1,1], index: 5, kind: input, shape index: {}]
  %s6 = inlined_call_operand.vmem [shape: f32[16,1], index: 6, kind: output, shape index: {}]
  %s7 = sld [smem:[#allocation0]]
  $region69: #{tpu_custom_call.1} parent=0
    _
  %s9 = ssub.s32 1, %s7
  %s10 = scalar_select 0, %s9, %s7
  %v11 = vstv %s5
  %12 = vst [vmem:[#allocation2] sm:$0x1] %v11
  $region1: #{tpu_custom_call.1} parent=0
    #allocation3 [shape = 'u8[16384]{0}', space=vmem, size = 0x4000, scoped, tag = 'input window, operand 0']
    #allocation4 [shape = 's32[2]{0}', space=sflag, size = 0x8, scoped, tag = 'scoped memory for tpu_custom_call.1']
    #allocation5 [shape = 'u8[4096]{0}', space=vmem, size = 0x1000, scoped, tag = 'input window, operand 1, single buffered']
    #allocation6 [shape = 's32[1]{0}', space=sflag, size = 0x4, scoped, tag = 'scoped memory for tpu_custom_call.1']
    #allocation7 [shape = 'u8[8192]{0}', space=vmem, size = 0x2000, scoped, tag = 'input window, operand 2, single buffered']
    %13 = vsyncpa [#allocation4], 0
    %s14 = scalar_lea.sflag [#allocation4], 1
    %15 = vsyncpa %s14, 0
    %16 = vsyncpa [#allocation6], 0
    loop: start=0, step=1, limit=4
    $region2: #{tpu_custom_call.1} parent=1 // loop_pre_header
      _
    $region3: #{tpu_custom_call.1} parent=1 // loop_header
      %s18 = sphi 0, %s22
      %p19 = scmp.ge.s32.totalorder %s18, 4
      %s28 = sphi 0, %s30
      %s31 = sphi 0, %s28
      %s32 = sphi 0, %s31
      %s48 = sphi 0, %s32
      %s52 = sphi 0, %s52
      %s54 = sphi 0, %s52
      %s55 = sphi 0, %s54
      %s69 = sphi 0, %s55
      %s73 = sphi 0, %s73
      %s75 = sphi 0, %s73
      %s76 = sphi 0, %s75
      %s90 = sphi 0, %s76
      %s94 = sphi 0, %s94
      %s96 = sphi 0, %s94
      %s97 = sphi 0, %s96
      %s111 = sphi 0, %s97
      %s115 = sphi 0, %s115
      %s117 = sphi 0, %s115
      %s118 = sphi 0, %s117
      %s132 = sphi 0, %s118
      %s136 = sphi 0, %s136
      %s138 = sphi 0, %s136
      %s139 = sphi 0, %s138
      %s153 = sphi 0, %s139
      %s159 = sphi 0, %s161
      %s162 = sphi 0, %s159
      %s163 = sphi 0, %s162
      %s179 = sphi 0, %s163
    $region4: #{tpu_custom_call.1} parent=1 // loop_header_branch
      %21 = sbr.rel (%p19) target = $region8
    $region5: #{tpu_custom_call.1} parent=1 // loop_body
      %s23 = ssub.s32 %s18, 1
      %s24 = ssub.s32 %s18, 2
      %s25 = sadd.s32 %s18, 1
      %s26 = ssub.s32 %s18, %s25
      %p27 = scmp.eq.s32.totalorder %s26, 0
      %s29 = sadd.s32 %s28, 1
      %s30 = scalar_select %p27, %s28, %s29
      %p33 = pneg %p27
      %p34 = scmp.eq.s32.totalorder %s18, 1
      %p35 = por %p33, %p34
      %p36 = scmp.ne.s32.totalorder %s28, %s31
      %p37 = scmp.eq.s32.totalorder %s18, 0
      %p38 = por %p36, %p37
      %p39 = scmp.ne.s32.totalorder %s28, %s31
      %p40 = scmp.eq.s32.totalorder %s23, 1
      %p41 = por %p39, %p40
      %p42 = scmp.ne.s32.totalorder %s31, %s32
      %p43 = scmp.eq.s32.totalorder %s23, 0
      %p44 = por %p42, %p43
      %p45 = scmp.ne.s32.totalorder %s31, %s32
      %p46 = scmp.eq.s32.totalorder %s24, 1
      %p47 = por %p45, %p46
      %p49 = scmp.ne.s32.totalorder %s32, %s48
      %p50 = scmp.eq.s32.totalorder %s24, 0
      %p51 = por %p49, %p50
      %s53 = sadd.s32 %s52, 1
      %p56 = scmp.eq.s32.totalorder %s18, 1
      %p57 = scmp.ne.s32.totalorder %s52, %s54
      %p58 = scmp.eq.s32.totalorder %s18, 0
      %p59 = por %p57, %p58
      %p60 = scmp.ne.s32.totalorder %s52, %s54
      %p61 = scmp.eq.s32.totalorder %s23, 1
      %p62 = por %p60, %p61
      %p63 = scmp.ne.s32.totalorder %s54, %s55
      %p64 = scmp.eq.s32.totalorder %s23, 0
      %p65 = por %p63, %p64
      %p66 = scmp.ne.s32.totalorder %s54, %s55
      %p67 = scmp.eq.s32.totalorder %s24, 1
      %p68 = por %p66, %p67
      %p70 = scmp.ne.s32.totalorder %s55, %s69
      %p71 = scmp.eq.s32.totalorder %s24, 0
      %p72 = por %p70, %p71
      %s74 = sadd.s32 %s73, 1
      %p77 = scmp.eq.s32.totalorder %s18, 1
      %p78 = scmp.ne.s32.totalorder %s73, %s75
      %p79 = scmp.eq.s32.totalorder %s18, 0
      %p80 = por %p78, %p79
      %p81 = scmp.ne.s32.totalorder %s73, %s75
      %p82 = scmp.eq.s32.totalorder %s23, 1
      %p83 = por %p81, %p82
      %p84 = scmp.ne.s32.totalorder %s75, %s76
      %p85 = scmp.eq.s32.totalorder %s23, 0
      %p86 = por %p84, %p85
      %p87 = scmp.ne.s32.totalorder %s75, %s76
      %p88 = scmp.eq.s32.totalorder %s24, 1
      %p89 = por %p87, %p88
      %p91 = scmp.ne.s32.totalorder %s76, %s90
      %p92 = scmp.eq.s32.totalorder %s24, 0
      %p93 = por %p91, %p92
      %s95 = sadd.s32 %s94, 1
      %p98 = scmp.eq.s32.totalorder %s18, 1
      %p99 = scmp.ne.s32.totalorder %s94, %s96
      %p100 = scmp.eq.s32.totalorder %s18, 0
      %p101 = por %p99, %p100
      %p102 = scmp.ne.s32.totalorder %s94, %s96
      %p103 = scmp.eq.s32.totalorder %s23, 1
      %p104 = por %p102, %p103
      %p105 = scmp.ne.s32.totalorder %s96, %s97
      %p106 = scmp.eq.s32.totalorder %s23, 0
      %p107 = por %p105, %p106
      %p108 = scmp.ne.s32.totalorder %s96, %s97
      %p109 = scmp.eq.s32.totalorder %s24, 1
      %p110 = por %p108, %p109
      %p112 = scmp.ne.s32.totalorder %s97, %s111
      %p113 = scmp.eq.s32.totalorder %s24, 0
      %p114 = por %p112, %p113
      %s116 = sadd.s32 %s115, 1
      %p119 = scmp.eq.s32.totalorder %s18, 1
      %p120 = scmp.ne.s32.totalorder %s115, %s117
      %p121 = scmp.eq.s32.totalorder %s18, 0
      %p122 = por %p120, %p121
      %p123 = scmp.ne.s32.totalorder %s115, %s117
      %p124 = scmp.eq.s32.totalorder %s23, 1
      %p125 = por %p123, %p124
      %p126 = scmp.ne.s32.totalorder %s117, %s118
      %p127 = scmp.eq.s32.totalorder %s23, 0
      %p128 = por %p126, %p127
      %p129 = scmp.ne.s32.totalorder %s117, %s118
      %p130 = scmp.eq.s32.totalorder %s24, 1
      %p131 = por %p129, %p130
      %p133 = scmp.ne.s32.totalorder %s118, %s132
      %p134 = scmp.eq.s32.totalorder %s24, 0
      %p135 = por %p133, %p134
      %s137 = sadd.s32 %s136, 1
      %p140 = scmp.eq.s32.totalorder %s18, 1
      %p141 = scmp.ne.s32.totalorder %s136, %s138
      %p142 = scmp.eq.s32.totalorder %s18, 0
      %p143 = por %p141, %p142
      %p144 = scmp.ne.s32.totalorder %s136, %s138
      %p145 = scmp.eq.s32.totalorder %s23, 1
      %p146 = por %p144, %p145
      %p147 = scmp.ne.s32.totalorder %s138, %s139
      %p148 = scmp.eq.s32.totalorder %s23, 0
      %p149 = por %p147, %p148
      %p150 = scmp.ne.s32.totalorder %s138, %s139
      %p151 = scmp.eq.s32.totalorder %s24, 1
      %p152 = por %p150, %p151
      %p154 = scmp.ne.s32.totalorder %s139, %s153
      %p155 = scmp.eq.s32.totalorder %s24, 0
      %p156 = por %p154, %p155
      %s157 = ssub.s32 %s18, %s25
      %p158 = scmp.eq.s32.totalorder %s157, 0
      %s160 = sadd.s32 %s159, 1
      %s161 = scalar_select %p158, %s159, %s160
      %p164 = pneg %p158
      %p165 = scmp.eq.s32.totalorder %s18, 1
      %p166 = por %p164, %p165
      %p167 = scmp.ne.s32.totalorder %s159, %s162
      %p168 = scmp.eq.s32.totalorder %s18, 0
      %p169 = por %p167, %p168
      %p170 = scmp.ne.s32.totalorder %s159, %s162
      %p171 = scmp.eq.s32.totalorder %s23, 1
      %p172 = por %p170, %p171
      %p173 = scmp.ne.s32.totalorder %s162, %s163
      %p174 = scmp.eq.s32.totalorder %s23, 0
      %p175 = por %p173, %p174
      %p176 = scmp.ne.s32.totalorder %s162, %s163
      %p177 = scmp.eq.s32.totalorder %s24, 1
      %p178 = por %p176, %p177
      %p180 = scmp.ne.s32.totalorder %s163, %s179
      %p181 = scmp.eq.s32.totalorder %s24, 0
      %p182 = por %p180, %p181
      %p183 = scmp.le.s32.totalorder 1, %s18
      %p184 = scmp.lt.s32.totalorder %s18, 3
      %p185 = pnand %p183, %p184
      %p186 = pneg %p185
      // Predicated region
      $region9: #{tpu_custom_call.1} parent=5 // pred_check
        _
      $region10: #{tpu_custom_call.1} parent=5 // pred_check_branch
        %188 = sbr.rel (%p185) target = $region12
      $region11: #{tpu_custom_call.1} parent=5 // pred_region
        %s189 = ssub.s32 %s18, 1
        // Predicated region
        $region13: #{tpu_custom_call.1} parent=11 // pred_check
          %p190 = pneg %p65
        $region14: #{tpu_custom_call.1} parent=11 // pred_check_branch
          %192 = sbr.rel (%p190) target = $region16
        $region15: #{tpu_custom_call.1} parent=11 // pred_region
          %s194 = ssub.s32 128, 128
          %195 = vsyncadd [#allocation6], %s194
          %s196 = sshll.u32 [#allocation5], 4
          %s197 = int_to_ptr.vmem [resolvable:$true] %s196
          %202 = dma.hbm_to_vmem [thread:$0]  %s1, 128, %s197, [#allocation6], 64, 64, 4
        $region16: #{tpu_custom_call.1} parent=11 // pred_fallthru
          _
        // Predicated region
        $region17: #{tpu_custom_call.1} parent=11 // pred_check
          %p203 = pneg %p86
        $region18: #{tpu_custom_call.1} parent=11 // pred_check_branch
          %205 = sbr.rel (%p203) target = $region20
        $region19: #{tpu_custom_call.1} parent=11 // pred_region
          %s207 = ssub.s32 256, 256
          %208 = vsyncadd [#allocation6], %s207
          %s209 = sshll.u32 [#allocation7], 4
          %s210 = int_to_ptr.vmem [resolvable:$true] %s209
          %215 = dma.hbm_to_vmem [thread:$0]  %s2, 256, %s210, [#allocation6], 64, 64, 4
        $region20: #{tpu_custom_call.1} parent=11 // pred_fallthru
          _
        // Predicated region
        $region21: #{tpu_custom_call.1} parent=11 // pred_check
          %p216 = pneg %p107
        $region22: #{tpu_custom_call.1} parent=11 // pred_check_branch
          %218 = sbr.rel (%p216) target = $region24
        $region23: #{tpu_custom_call.1} parent=11 // pred_region
          _
        $region24: #{tpu_custom_call.1} parent=11 // pred_fallthru
          _
        // Predicated region
        $region25: #{tpu_custom_call.1} parent=11 // pred_check
          %p219 = pneg %p128
        $region26: #{tpu_custom_call.1} parent=11 // pred_check_branch
          %221 = sbr.rel (%p219) target = $region28
        $region27: #{tpu_custom_call.1} parent=11 // pred_region
          _
        $region28: #{tpu_custom_call.1} parent=11 // pred_fallthru
          _
        // Predicated region
        $region29: #{tpu_custom_call.1} parent=11 // pred_check
          %p222 = pneg %p149
        $region30: #{tpu_custom_call.1} parent=11 // pred_check_branch
          %224 = sbr.rel (%p222) target = $region32
        $region31: #{tpu_custom_call.1} parent=11 // pred_region
          _
        $region32: #{tpu_custom_call.1} parent=11 // pred_fallthru
          _
      $region12: #{tpu_custom_call.1} parent=5 // pred_fallthru
        _
      %p225 = scmp.lt.s32.totalorder %s18, 2
      // Predicated region
      $region33: #{tpu_custom_call.1} parent=5 // pred_check
        %p226 = pneg %p225
      $region34: #{tpu_custom_call.1} parent=5 // pred_check_branch
        %228 = sbr.rel (%p226) target = $region36
      $region35: #{tpu_custom_call.1} parent=5 // pred_region
        // Predicated region
        $region37: #{tpu_custom_call.1} parent=35 // pred_check
          %p229 = pneg %p38
        $region38: #{tpu_custom_call.1} parent=35 // pred_check_branch
          %231 = sbr.rel (%p229) target = $region40
        $region39: #{tpu_custom_call.1} parent=35 // pred_region
          %s232 = sand.u32 %s28, 1
          %s233 = scalar_lea.sflag [#allocation4], %s232
          %s234 = sand.u32 %s28, 1
          %s235 = smul.addr %s234, 16
          %s236 = scalar_lea.vmem [#allocation3], %s235
          %s238 = ssub.s32 256, 256
          %239 = vsyncadd %s233, %s238
          %s240 = smul.addr %s18, 128
          %s241 = scalar_lea.hbm %s0, %s240
          %s242 = sshll.u32 %s236, 4
          %s243 = int_to_ptr.vmem [resolvable:$true] %s242
          %248 = dma.hbm_to_vmem [thread:$0]  %s241, 256, %s243, %s233, 256, 128, 8
        $region40: #{tpu_custom_call.1} parent=35 // pred_fallthru
          _
      $region36: #{tpu_custom_call.1} parent=5 // pred_fallthru
        _
      %p249 = scmp.le.s32.totalorder 1, %s18
      %p250 = scmp.lt.s32.totalorder %s18, 3
      %p251 = pnand %p249, %p250
      %p252 = pneg %p251
      // Predicated region
      $region41: #{tpu_custom_call.1} parent=5 // pred_check
        _
      $region42: #{tpu_custom_call.1} parent=5 // pred_check_branch
        %254 = sbr.rel (%p251) target = $region44
      $region43: #{tpu_custom_call.1} parent=5 // pred_region
        %s255 = ssub.s32 %s18, 1
        %s256 = sand.u32 %s31, 1
        %s257 = scalar_lea.sflag [#allocation4], %s256
        %s258 = sand.u32 %s31, 1
        %s259 = smul.addr %s258, 16
        %s260 = scalar_lea.vmem [#allocation3], %s259
        // Predicated region
        $region45: #{tpu_custom_call.1} parent=43 // pred_check
          %p261 = pneg %p44
        $region46: #{tpu_custom_call.1} parent=43 // pred_check_branch
          %263 = sbr.rel (%p261) target = $region48
        $region47: #{tpu_custom_call.1} parent=43 // pred_region
          %264 = dma.done %s257, 256
        $region48: #{tpu_custom_call.1} parent=43 // pred_fallthru
          _
        // Predicated region
        $region49: #{tpu_custom_call.1} parent=43 // pred_check
          %p265 = pneg %p65
        $region50: #{tpu_custom_call.1} parent=43 // pred_check_branch
          %267 = sbr.rel (%p265) target = $region52
        $region51: #{tpu_custom_call.1} parent=43 // pred_region
          %268 = dma.done [#allocation6], 128
        $region52: #{tpu_custom_call.1} parent=43 // pred_fallthru
          _
        // Predicated region
        $region53: #{tpu_custom_call.1} parent=43 // pred_check
          %p269 = pneg %p86
        $region54: #{tpu_custom_call.1} parent=43 // pred_check_branch
          %271 = sbr.rel (%p269) target = $region56
        $region55: #{tpu_custom_call.1} parent=43 // pred_region
          %272 = dma.done [#allocation6], 256
        $region56: #{tpu_custom_call.1} parent=43 // pred_fallthru
          _
        %s273 = sand.u32 %s31, 1
        %s274 = scalar_lea.sflag [#allocation4], %s273
        %s275 = sand.u32 %s31, 1
        %s276 = smul.addr %s275, 16
        %s277 = scalar_lea.vmem [#allocation3], %s276
        %p278 = pneg %p44
        %p279 = pneg %p41
        %p280 = pneg %p65
        %p281 = pneg %p62
        %p282 = pneg %p86
        %p283 = pneg %p83
        %p284 = pneg %p107
        %p285 = pneg %p104
        %p286 = pneg %p128
        %p287 = pneg %p125
        %p288 = pneg %p149
        %p289 = pneg %p146
        %p290 = pneg %p175
        %p291 = pneg %p172
        %p292 = scmp.lt.s32.totalorder %s23, 1
        %s293 = scalar_select %p292, %s23, 1
        %s294 = smul.addr %s293, 8
        %s295 = scalar_lea.vmem %s6, %s294
        %p296 = scmp.lt.s32.totalorder %s23, 1
        %s297 = scalar_select %p296, %s23, 1
        %s298 = smul.addr %s297, 8
        %s299 = scalar_lea.vmem %s6, %s298
        %v301 = vld [vmem:[%s260] sm:$0xff]
        %v302 = vld [vmem:[%s260 + $0x8] sm:$0xff]
        %v303 = vpack.c.bf16 %v302, %v301
        %v304 = vld [vmem:[#allocation5] sm:$0xf]
        %v305 = vld [vmem:[#allocation5 + $0x4] sm:$0xf]
        %v306 = vld [vmem:[%s3] sm:$0x1]
        %v308 = vlaneseq
        %v309 = vshrl.u32 %v308, 7
        %v310 = vsub.s32 0, %v309
        %v311 = vrot.slane %v306, %v310
        %v315 = vunpack.c.l.b16 %v304
        %v316 = vunpack.c.l.b16 %v305
        %v317 = vpack.c.b16 %v316, %v315
        %vm319 = vcmask 130048
        %v321 = vsel %vm319, %v303, 0
        %323 = vmatprep.subr.bf16.mxu0 0
        %324 = vmatpush1.bf16.msra.mxu0 %v317
        %325 = vmatprep.subr.bf16.mxu0 0
        %326 = vmatpush1.bf16.msra.mxu0 0
        %327 = vmatprep.subr.bf16.mxu0 0
        %328 = vmatpush1.bf16.msra.mxu0 0
        %329 = vmatprep.subr.bf16.mxu0 0
        %330 = vmatpush1.bf16.msra.mxu0 0
        %331 = vmatprep.subr.bf16.mxu0 0
        %332 = vmatpush1.bf16.msra.mxu0 0
        %333 = vmatprep.subr.bf16.mxu0 0
        %334 = vmatpush1.bf16.msra.mxu0 0
        %335 = vmatprep.subr.bf16.mxu0 0
        %336 = vmatpush1.bf16.msra.mxu0 0
        %337 = vmatprep.subr.bf16.mxu0 0
        %338 = vmatpush1.bf16.msra.mxu0 0
        %339 = vmatprep.subr.bf16.mxu0 0
        %340 = vmatpush1.bf16.msra.mxu0 0
        %341 = vmatprep.subr.bf16.mxu0 0
        %342 = vmatpush1.bf16.msra.mxu0 0
        %343 = vmatprep.subr.bf16.mxu0 0
        %344 = vmatpush1.bf16.msra.mxu0 0
        %345 = vmatprep.subr.bf16.mxu0 0
        %346 = vmatpush1.bf16.msra.mxu0 0
        %347 = vmatprep.subr.bf16.mxu0 0
        %348 = vmatpush1.bf16.msra.mxu0 0
        %349 = vmatprep.subr.bf16.mxu0 0
        %350 = vmatpush1.bf16.msra.mxu0 0
        %351 = vmatprep.subr.bf16.mxu0 0
        %352 = vmatpush1.bf16.msra.mxu0 0
        %353 = vmatprep.subr.bf16.mxu0 0
        %354 = vmatpush1.bf16.msra.mxu0 0
        %355 = vmatprep.mubr.bf16.mxu0 0
        %356 = vmatmul.mubr.bf16.gmra.mrb[0].mxu0 %v321
        %v357 = vpop.f32.mrb[0].mxu0
        %v358 = vadd.f32 %v311, %v357
        %v359 = vpop.f32.mrb[0].mxu0
        %v360 = vpop.f32.mrb[0].mxu0
        %v361 = vadd.f32 %v311, %v360
        %v362 = vpop.f32.mrb[0].mxu0
        %363 = vdwg.mxu0
        %v364 = vld [vmem:[#allocation7] sm:$0xf]
        %v365 = vld [vmem:[#allocation7 + $0x4] sm:$0xf]
        %v366 = vld [vmem:[#allocation7 + $0x8] sm:$0xf]
        %v367 = vld [vmem:[#allocation7 + $0xc] sm:$0xf]
        %v368 = vxor.u32 %v358, 2147483648
        %v369 = vmul.f32 %v368, 1.442695
        %v370 = vpow.pop %v369
        %v371 = vadd.f32 %v370, 1.0
        %v372 = vrcp.pop %v371
        %v373 = vmul.f32 1.0, %v372
        %v374 = vtanh.pop %v358
        %v375 = vmul.f32 %v373, 0.0
        %377 = vrot.lane.b32.xlu0 %v374, 64
        %v378 = vpop.permute.xlu0 %377
        %v380 = vmul.f32 %v373, %v378
        %382 = vrot.lane.b32.xlu0 %v380, 32
        %v383 = vpop.permute.xlu0 %382
        %v385 = vadd.f32 %v375, %v383
        %v386 = vtanh.pop %v385
        %388 = vrot.lane.b32.xlu0 %v386, 64
        %v389 = vpop.permute.xlu0 %388
        %v391 = vmul.f32 %v373, %v389
        %v392 = vpack.c.bf16 %v391, %v391
        %394 = vrot.lane.b32.xlu0 %v392, 32
        %v395 = vpop.permute.xlu0 %394
        %v400 = vunpack.c.l.b16 %v364
        %v401 = vunpack.c.l.b16 %v365
        %v402 = vunpack.c.l.b16 %v366
        %v403 = vunpack.c.l.b16 %v367
        %v404 = vpack.c.b16 %v401, %v400
        %v405 = vpack.c.b16 %v403, %v402
        %vm408 = vcmask 261120
        %v410 = vsel %vm408, %v395, 0
        %412 = vmatprep.subr.bf16.mxu0 0
        %413 = vmatpush1.bf16.msra.mxu0 %v404
        %414 = vmatprep.subr.bf16.mxu0 0
        %415 = vmatpush1.bf16.msra.mxu0 %v405
        %416 = vmatprep.subr.bf16.mxu0 0
        %417 = vmatpush1.bf16.msra.mxu0 0
        %418 = vmatprep.subr.bf16.mxu0 0
        %419 = vmatpush1.bf16.msra.mxu0 0
        %420 = vmatprep.subr.bf16.mxu0 0
        %421 = vmatpush1.bf16.msra.mxu0 0
        %422 = vmatprep.subr.bf16.mxu0 0
        %423 = vmatpush1.bf16.msra.mxu0 0
        %424 = vmatprep.subr.bf16.mxu0 0
        %425 = vmatpush1.bf16.msra.mxu0 0
        %426 = vmatprep.subr.bf16.mxu0 0
        %427 = vmatpush1.bf16.msra.mxu0 0
        %428 = vmatprep.subr.bf16.mxu0 0
        %429 = vmatpush1.bf16.msra.mxu0 0
        %430 = vmatprep.subr.bf16.mxu0 0
        %431 = vmatpush1.bf16.msra.mxu0 0
        %432 = vmatprep.subr.bf16.mxu0 0
        %433 = vmatpush1.bf16.msra.mxu0 0
        %434 = vmatprep.subr.bf16.mxu0 0
        %435 = vmatpush1.bf16.msra.mxu0 0
        %436 = vmatprep.subr.bf16.mxu0 0
        %437 = vmatpush1.bf16.msra.mxu0 0
        %438 = vmatprep.subr.bf16.mxu0 0
        %439 = vmatpush1.bf16.msra.mxu0 0
        %440 = vmatprep.subr.bf16.mxu0 0
        %441 = vmatpush1.bf16.msra.mxu0 0
        %442 = vmatprep.subr.bf16.mxu0 0
        %443 = vmatpush1.bf16.msra.mxu0 0
        %444 = vmatprep.mubr.bf16.mxu0 0
        %445 = vmatmul.mubr.bf16.gmra.mrb[0].mxu0 %v410
        %v446 = vpop.f32.mrb[0].mxu0
        %v447 = vadd.f32 0.0, %v446
        %v448 = vpop.f32.mrb[0].mxu0
        %v449 = vpop.f32.mrb[0].mxu0
        %v450 = vpop.f32.mrb[0].mxu0
        %451 = vdwg.mxu0
        %v452 = vadd.f32 %v361, %v447
        %v453 = vxor.u32 %v452, 2147483648
        %v454 = vmul.f32 %v453, 1.442695
        %v455 = vpow.pop %v454
        %v456 = vadd.f32 %v455, 1.0
        %v457 = vrcp.pop %v456
        %v458 = vmul.f32 1.0, %v457
        %v459 = vtanh.pop %v452
        %v460 = vmul.f32 %v458, %v385
        %462 = vrot.lane.b32.xlu0 %v459, 64
        %v463 = vpop.permute.xlu0 %462
        %v465 = vmul.f32 %v458, %v463
        %467 = vrot.lane.b32.xlu0 %v465, 32
        %v468 = vpop.permute.xlu0 %467
        %v470 = vadd.f32 %v460, %v468
        %v471 = vtanh.pop %v470
        %473 = vrot.lane.b32.xlu0 %v471, 64
        %v474 = vpop.permute.xlu0 %473
        %v476 = vmul.f32 %v458, %v474
        %v477 = vld [vmem:[%s4] sm:$0x1]
        %v479 = vlaneseq
        %v480 = vshrl.u32 %v479, 7
        %v481 = vsub.s32 0, %v480
        %v482 = vrot.slane %v477, %v481
        %483 = vrot.lane.b32.xlu0 %v482, 96
        %v484 = vpop.permute.xlu0 %483
        %v486 = vmul.f32 %v476, %v484
        %488 = vrot.lane.b32.xlu0 %v486, 32
        %v489 = vpop.permute.xlu0 %488
        %v491 = vsel %vm408, %v489, 0.0
        %492 = vadd.xlane.f32.xlu0 %v491
        %v493 = vpop.xlane.xlu0 %492
        %v494 = vld [vmem:[#allocation2] sm:$0x1]
        %v496 = vlaneseq
        %v497 = vshrl.u32 %v496, 7
        %v498 = vsub.s32 0, %v497
        %v499 = vrot.slane %v494, %v498
        %v501 = vadd.f32 %v493, %v499
        %vm502 = vcmask 7168
        %503 = vst.msk [vmem:[%s299] sm:$0xff] %vm502, %v501
        %p504 = scmp.lt.s32.totalorder %s23, 1
        %s505 = scalar_select %p504, %s23, 1
        %s506 = smul.addr %s505, 8
        %s507 = scalar_lea.vmem %s6, %s506
        // Predicated region
        $region57: #{tpu_custom_call.1} parent=43 // pred_check
          %p508 = pneg %p172
        $region58: #{tpu_custom_call.1} parent=43 // pred_check_branch
          %510 = sbr.rel (%p508) target = $region60
        $region59: #{tpu_custom_call.1} parent=43 // pred_region
          _
        $region60: #{tpu_custom_call.1} parent=43 // pred_fallthru
          _
      $region44: #{tpu_custom_call.1} parent=5 // pred_fallthru
        _
      %p511 = scmp.le.s32.totalorder 2, %s18
      // Predicated region
      $region61: #{tpu_custom_call.1} parent=5 // pred_check
        %p512 = pneg %p511
      $region62: #{tpu_custom_call.1} parent=5 // pred_check_branch
        %514 = sbr.rel (%p512) target = $region64
      $region63: #{tpu_custom_call.1} parent=5 // pred_region
        %s515 = ssub.s32 %s18, 2
        // Predicated region
        $region65: #{tpu_custom_call.1} parent=63 // pred_check
          %p516 = pneg %p178
        $region66: #{tpu_custom_call.1} parent=63 // pred_check_branch
          %518 = sbr.rel (%p516) target = $region68
        $region67: #{tpu_custom_call.1} parent=63 // pred_region
          %p519 = scmp.lt.s32.totalorder %s24, 1
          %s520 = scalar_select %p519, %s24, 1
          %s521 = smul.addr %s520, 8
          %s522 = scalar_lea.vmem %s6, %s521
        $region68: #{tpu_custom_call.1} parent=63 // pred_fallthru
          _
      $region64: #{tpu_custom_call.1} parent=5 // pred_fallthru
        _
    $region6: #{tpu_custom_call.1} parent=1 // loop_footer
      %s22 = sadd.s32 1, %s18
    $region7: #{tpu_custom_call.1} parent=1 // loop_footer_branch
      %17 = sbr.rel target = $region3
    $region8: #{tpu_custom_call.1} parent=1 // loop_exit
      _
    %523 = vsyncpa [#allocation4], 1
    %s524 = scalar_lea.sflag [#allocation4], 1
    %525 = vsyncpa %s524, 1
    %526 = vsyncpa [#allocation6], 1

</llo_original>
